<compile_context>
chip_gen: v6e
topology: v6e:2x2x1
jax: 0.10.0
libtpu: 0.0.40
codegen_flags: <defaults>
</compile_context>

<pallas_src>
import jax
import jax.numpy as jnp
from jax.experimental import pallas as pl
from jax.experimental.pallas import tpu as pltpu


def _critic_kernel(obs_t_ref, act_t_ref,
                   w1o_ref, w1a_ref, b1_ref,
                   w2_ref, b2_ref,
                   w3_ref, b3_ref,
                   o_ref):
    # Streamed tiles arrive batch-on-lanes: obs_t (obs_dim, TB), act_t (act_dim, TB).
    # Cast to bf16 in-kernel (no wrapper-side HBM pass for the cast).
    obs = obs_t_ref[...].astype(jnp.bfloat16)
    act = act_t_ref[...].astype(jnp.bfloat16)

    # Layer 1 (folds the obs/act concat):
    #   h1 = W1_obs @ obs^T + W1_act @ act^T + b1   -> (h0, TB), lane-dense.
    h1 = (jnp.dot(w1o_ref[...], obs, preferred_element_type=jnp.float32)
          + jnp.dot(w1a_ref[...], act, preferred_element_type=jnp.float32)
          + b1_ref[...])                      # b1 is (h0, 1): broadcast on lanes
    h1 = jnp.maximum(h1, 0.0)

    # Layer 2: h2 = W2 @ h1 + b2 -> (h1_dim, TB), lane-dense.
    h2 = jnp.dot(w2_ref[...], h1.astype(jnp.bfloat16),
                 preferred_element_type=jnp.float32) + b2_ref[...]
    h2 = jnp.maximum(h2, 0.0)

    # Layer 3: out = W3 @ h2 + b3 -> (1, TB) lane-dense output slab (unmasked vst).
    o_ref[...] = (jnp.dot(w3_ref[...], h2.astype(jnp.bfloat16),
                          preferred_element_type=jnp.float32) + b3_ref[...])


def _round_up(x, m):
    return ((x + m - 1) // m) * m


def critic_forward(observation, action, params, *, tb=4096):
    """Pallas implementation of Critic.forward.

    observation: (B, obs_dim) float32
    action:      (B, act_dim) float32
    params: dict with (torch (out, in) orientation)
        w1_obs (h0, obs_dim) bf16, w1_act (h0, act_dim) bf16, b1 (h0, 1) f32,
        w2 (h1, h0) bf16, b2 (h1, 1) f32,
        w3 (1, h1) bf16, b3 (1, 1) f32.
    returns: (B, 1) float32
    """
    B, obs_dim = observation.shape
    act_dim = action.shape[1]
    h0 = params["w1_obs"].shape[0]
    h1 = params["w2"].shape[0]

    # Fit the tile to the batch: minimize grid steps (each ~0.35 us of pipeline
    # overhead) while keeping the padded tail small and tiles lane-multiples.
    num_tiles = pl.cdiv(B, tb)
    tb = _round_up(pl.cdiv(B, num_tiles), 128)
    b_pad = num_tiles * tb

    # Single cheap wrapper op per input: transpose to batch-on-lanes (+ pad).
    # No wrapper-side dtype cast (done in-kernel).  The padded columns flow
    # through relu(b1)/relu(b2) and are sliced off below.
    obs_t = observation.T
    act_t = action.T
    if b_pad != B:
        obs_t = jnp.pad(obs_t, ((0, 0), (0, b_pad - B)))
        act_t = jnp.pad(act_t, ((0, 0), (0, b_pad - B)))

    def stream(d):
        # Batch-tiled activation stream: block i covers columns [i*tb, (i+1)*tb).
        return pl.BlockSpec((d, tb), lambda i: (0, i))

    def resident(shape):
        # Full-array block, constant index_map => pinned in VMEM across steps.
        return pl.BlockSpec(shape, lambda i: (0, 0))

    out = pl.pallas_call(
        _critic_kernel,
        out_shape=jax.ShapeDtypeStruct((1, b_pad), jnp.float32),
        grid_spec=pltpu.PrefetchScalarGridSpec(
            num_scalar_prefetch=0,
            grid=(num_tiles,),
            in_specs=[
                stream(obs_dim),              # obs^T tile (streamed)
                stream(act_dim),              # act^T tile (streamed)
                resident((h0, obs_dim)),      # W1_obs
                resident((h0, act_dim)),      # W1_act
                resident((h0, 1)),            # b1
                resident((h1, h0)),           # W2
                resident((h1, 1)),            # b2
                resident((1, h1)),            # W3
                resident((1, 1)),             # b3
            ],
            out_specs=pl.BlockSpec((1, tb), lambda i: (0, i)),
        ),
        compiler_params=pltpu.CompilerParams(
            # Batch axis is independent: "parallel" lets multi-TC parts shard
            # it (no-op on single-TC v5e/v6e).  On v7x, pltpu.CORE_PARALLEL
            # with an even num_tiles is a further ~2x lever for large B.
            dimension_semantics=("parallel",)),
    )(obs_t, act_t,
      params["w1_obs"], params["w1_act"], params["b1"],
      params["w2"], params["b2"],
      params["w3"], params["b3"])

    # (1, b_pad) -> (b_pad, 1), drop padded tail.
    return out.reshape(b_pad, 1)[:B]


def init_critic_params(key, obs_dim, act_dim, hidden_dims):
    """Synthetic init mirroring PyTorch nn.Linear defaults (2 hidden layers)."""
    assert len(hidden_dims) == 2, "kernel is specialized for 2 hidden layers"
    dims = [obs_dim + act_dim] + list(hidden_dims) + [1]
    keys = jax.random.split(key, len(dims) - 1)
    raw = []
    for i, (d_in, d_out) in enumerate(zip(dims[:-1], dims[1:])):
        bound = float(d_in) ** -0.5
        wk, bk = jax.random.split(keys[i])
        w = jax.random.uniform(wk, (d_out, d_in), jnp.float32, -bound, bound)
        b = jax.random.uniform(bk, (d_out, 1), jnp.float32, -bound, bound)
        raw.append((w, b))

    (w1, b1), (w2, b2), (w3, b3) = raw
    return {
        # First layer split along the input axis (obs | act); all weights kept
        # in torch (out, in) orientation for the batch-on-lanes kernel.
        "w1_obs": w1[:, :obs_dim].astype(jnp.bfloat16),   # (h0, obs_dim)
        "w1_act": w1[:, obs_dim:].astype(jnp.bfloat16),   # (h0, act_dim)
        "b1": b1,                                         # (h0, 1)
        "w2": w2.astype(jnp.bfloat16),                    # (h1, h0)
        "b2": b2,                                         # (h1, 1)
        "w3": w3.astype(jnp.bfloat16),                    # (1, h1)
        "b3": b3,                                         # (1, 1)
    }


def _reference_forward(observation, action, params):
    # Pure-JAX reference with the same bf16-on-MXU / f32-accumulate path.
    obs = observation.astype(jnp.bfloat16)
    act = action.astype(jnp.bfloat16)
    h = (jnp.dot(obs, params["w1_obs"].T, preferred_element_type=jnp.float32)
         + jnp.dot(act, params["w1_act"].T, preferred_element_type=jnp.float32)
         + params["b1"].T)
    h = jnp.maximum(h, 0.0)
    h = jnp.dot(h.astype(jnp.bfloat16), params["w2"].T,
                preferred_element_type=jnp.float32) + params["b2"].T
    h = jnp.maximum(h, 0.0)
    return jnp.dot(h.astype(jnp.bfloat16), params["w3"].T,
                   preferred_element_type=jnp.float32) + params["b3"]


if __name__ == "__main__":
    key = jax.random.PRNGKey(0)
    k_obs, k_act, k_params = jax.random.split(key, 3)

    batch = 200            # not a multiple of 128 -> exercises the padded tail
    obs_dim = 12
    act_dim = 4
    hidden_dims = (32, 32)

    observation = jax.random.normal(k_obs, (batch, obs_dim), jnp.float32)
    action = jax.random.normal(k_act, (batch, act_dim), jnp.float32)
    params = init_critic_params(k_params, obs_dim, act_dim, hidden_dims)

    # Default config: whole batch fits in one grid step (tb fitted to 256).
    fwd_single = jax.jit(lambda o, a: critic_forward(o, a, params))
    out = jax.block_until_ready(fwd_single(observation, action))

    # Forced small tile -> 2 grid steps: exercises the streamed multi-tile path.
    fwd_tiled = jax.jit(lambda o, a: critic_forward(o, a, params, tb=128))
    out_tiled = jax.block_until_ready(fwd_tiled(observation, action))

    ref = _reference_forward(observation, action, params)
    assert out.shape == (batch, 1), out.shape
    assert out_tiled.shape == (batch, 1), out_tiled.shape
    assert jnp.allclose(out, ref, atol=1e-2, rtol=1e-2), \
        float(jnp.max(jnp.abs(out - ref)))
    assert jnp.allclose(out_tiled, ref, atol=1e-2, rtol=1e-2), \
        float(jnp.max(jnp.abs(out_tiled - ref)))

    print("KERNEL_OK")
</pallas_src>

<mosaic_0001>
module attributes {stable_mosaic.version = 11 : i64} {
  func.func @_critic_kernel(%arg0: i32, %arg1: memref<12x256xf32, #tpu.memory_space<vmem>>, %arg2: memref<4x256xf32, #tpu.memory_space<vmem>>, %arg3: memref<32x12xbf16, #tpu.memory_space<vmem>>, %arg4: memref<32x4xbf16, #tpu.memory_space<vmem>>, %arg5: memref<32x1xf32, #tpu.memory_space<vmem>>, %arg6: memref<32x32xbf16, #tpu.memory_space<vmem>>, %arg7: memref<32x1xf32, #tpu.memory_space<vmem>>, %arg8: memref<1x32xbf16, #tpu.memory_space<vmem>>, %arg9: memref<1x1xf32, #tpu.memory_space<vmem>>, %arg10: memref<1x256xf32, #tpu.memory_space<vmem>>) attributes {dimension_semantics = [#tpu.dimension_semantics<parallel>], iteration_bounds = array<i64: 1>, scalar_prefetch = 0 : i64, scratch_operands = 0 : i64, tpu.core_type = #tpu.core_type<tc>, window_params = [{transform_indices = @transform_0, window_bounds = array<i64: 12, 256>}, {transform_indices = @transform_1, window_bounds = array<i64: 4, 256>}, {pipeline_mode = #tpu.pipeline_mode<synchronous>, transform_indices = @transform_2, window_bounds = array<i64: 32, 12>}, {pipeline_mode = #tpu.pipeline_mode<synchronous>, transform_indices = @transform_3, window_bounds = array<i64: 32, 4>}, {pipeline_mode = #tpu.pipeline_mode<synchronous>, transform_indices = @transform_4, window_bounds = array<i64: 32, 1>}, {pipeline_mode = #tpu.pipeline_mode<synchronous>, transform_indices = @transform_5, window_bounds = array<i64: 32, 32>}, {pipeline_mode = #tpu.pipeline_mode<synchronous>, transform_indices = @transform_6, window_bounds = array<i64: 32, 1>}, {pipeline_mode = #tpu.pipeline_mode<synchronous>, transform_indices = @transform_7, window_bounds = array<i64: 1, 32>}, {pipeline_mode = #tpu.pipeline_mode<synchronous>, transform_indices = @transform_8, window_bounds = array<i64: 1, 1>}, {transform_indices = @transform_9, window_bounds = array<i64: 1, 256>}]} {
    %c0 = arith.constant 0 : index
    %c0_0 = arith.constant 0 : index
    %0 = vector.load %arg1[%c0, %c0_0] : memref<12x256xf32, #tpu.memory_space<vmem>>, vector<12x256xf32>
    %1 = arith.truncf %0 : vector<12x256xf32> to vector<12x256xbf16>
    %c0_1 = arith.constant 0 : index
    %c0_2 = arith.constant 0 : index
    %2 = vector.load %arg2[%c0_1, %c0_2] : memref<4x256xf32, #tpu.memory_space<vmem>>, vector<4x256xf32>
    %3 = arith.truncf %2 : vector<4x256xf32> to vector<4x256xbf16>
    %c0_3 = arith.constant 0 : index
    %c0_4 = arith.constant 0 : index
    %4 = vector.load %arg3[%c0_3, %c0_4] : memref<32x12xbf16, #tpu.memory_space<vmem>>, vector<32x12xbf16>
    %cst = arith.constant dense<0.000000e+00> : vector<32x256xf32>
    %5 = tpu.matmul %4, %1, %cst {dimension_numbers = #tpu.dot_dimension_numbers<[1], [0], [0], [1], [0, 0, 1, 1], [], []>} : vector<32x12xbf16>, vector<12x256xbf16>, vector<32x256xf32> -> vector<32x256xf32>
    %c0_5 = arith.constant 0 : index
    %c0_6 = arith.constant 0 : index
    %6 = vector.load %arg4[%c0_5, %c0_6] : memref<32x4xbf16, #tpu.memory_space<vmem>>, vector<32x4xbf16>
    %cst_7 = arith.constant dense<0.000000e+00> : vector<32x256xf32>
    %7 = tpu.matmul %6, %3, %cst_7 {dimension_numbers = #tpu.dot_dimension_numbers<[1], [0], [0], [1], [0, 0, 1, 1], [], []>} : vector<32x4xbf16>, vector<4x256xbf16>, vector<32x256xf32> -> vector<32x256xf32>
    %8 = arith.addf %5, %7 : vector<32x256xf32>
    %c0_8 = arith.constant 0 : index
    %c0_9 = arith.constant 0 : index
    %9 = vector.load %arg5[%c0_8, %c0_9] : memref<32x1xf32, #tpu.memory_space<vmem>>, vector<32x1xf32>
    %10 = vector.broadcast %9 : vector<32x1xf32> to vector<32x256xf32>
    %11 = arith.addf %8, %10 : vector<32x256xf32>
    %cst_10 = arith.constant 0.000000e+00 : f32
    %12 = vector.broadcast %cst_10 : f32 to vector<32x256xf32>
    %13 = arith.maximumf %11, %12 : vector<32x256xf32>
    %c0_11 = arith.constant 0 : index
    %c0_12 = arith.constant 0 : index
    %14 = vector.load %arg6[%c0_11, %c0_12] : memref<32x32xbf16, #tpu.memory_space<vmem>>, vector<32x32xbf16>
    %15 = arith.truncf %13 : vector<32x256xf32> to vector<32x256xbf16>
    %cst_13 = arith.constant dense<0.000000e+00> : vector<32x256xf32>
    %16 = tpu.matmul %14, %15, %cst_13 {dimension_numbers = #tpu.dot_dimension_numbers<[1], [0], [0], [1], [0, 0, 1, 1], [], []>} : vector<32x32xbf16>, vector<32x256xbf16>, vector<32x256xf32> -> vector<32x256xf32>
    %c0_14 = arith.constant 0 : index
    %c0_15 = arith.constant 0 : index
    %17 = vector.load %arg7[%c0_14, %c0_15] : memref<32x1xf32, #tpu.memory_space<vmem>>, vector<32x1xf32>
    %18 = vector.broadcast %17 : vector<32x1xf32> to vector<32x256xf32>
    %19 = arith.addf %16, %18 : vector<32x256xf32>
    %cst_16 = arith.constant 0.000000e+00 : f32
    %20 = vector.broadcast %cst_16 : f32 to vector<32x256xf32>
    %21 = arith.maximumf %19, %20 : vector<32x256xf32>
    %c0_17 = arith.constant 0 : index
    %c0_18 = arith.constant 0 : index
    %22 = vector.load %arg8[%c0_17, %c0_18] : memref<1x32xbf16, #tpu.memory_space<vmem>>, vector<1x32xbf16>
    %23 = arith.truncf %21 : vector<32x256xf32> to vector<32x256xbf16>
    %cst_19 = arith.constant dense<0.000000e+00> : vector<1x256xf32>
    %24 = tpu.matmul %22, %23, %cst_19 {dimension_numbers = #tpu.dot_dimension_numbers<[1], [0], [0], [1], [0, 0, 1, 1], [], []>} : vector<1x32xbf16>, vector<32x256xbf16>, vector<1x256xf32> -> vector<1x256xf32>
    %c0_20 = arith.constant 0 : index
    %c0_21 = arith.constant 0 : index
    %25 = vector.load %arg9[%c0_20, %c0_21] : memref<1x1xf32, #tpu.memory_space<vmem>>, vector<1x1xf32>
    %26 = vector.broadcast %25 : vector<1x1xf32> to vector<1x256xf32>
    %27 = arith.addf %24, %26 : vector<1x256xf32>
    %c0_22 = arith.constant 0 : index
    %c0_23 = arith.constant 0 : index
    %28 = vector.load %arg10[%c0_22, %c0_23] : memref<1x256xf32, #tpu.memory_space<vmem>>, vector<1x256xf32>
    tpu.vector_store %arg10[%c0_22, %c0_23], %27 {strides = array<i32>} : memref<1x256xf32, #tpu.memory_space<vmem>>, vector<1x256xf32>,
    return
  }
  func.func @transform_0(%arg0: i32) -> (i32, i32) {
    %c0_i32 = arith.constant 0 : i32
    %c0_i32_0 = arith.constant 0 : i32
    return %c0_i32, %arg0 : i32, i32
  }
  func.func @transform_1(%arg0: i32) -> (i32, i32) {
    %c0_i32 = arith.constant 0 : i32
    %c0_i32_0 = arith.constant 0 : i32
    return %c0_i32, %arg0 : i32, i32
  }
  func.func @transform_2(%arg0: i32) -> (i32, i32) {
    %c0_i32 = arith.constant 0 : i32
    %c0_i32_0 = arith.constant 0 : i32
    %c0_i32_1 = arith.constant 0 : i32
    return %c0_i32, %c0_i32_0 : i32, i32
  }
  func.func @transform_3(%arg0: i32) -> (i32, i32) {
    %c0_i32 = arith.constant 0 : i32
    %c0_i32_0 = arith.constant 0 : i32
    %c0_i32_1 = arith.constant 0 : i32
    return %c0_i32, %c0_i32_0 : i32, i32
  }
  func.func @transform_4(%arg0: i32) -> (i32, i32) {
    %c0_i32 = arith.constant 0 : i32
    %c0_i32_0 = arith.constant 0 : i32
    %c0_i32_1 = arith.constant 0 : i32
    return %c0_i32, %c0_i32_0 : i32, i32
  }
  func.func @transform_5(%arg0: i32) -> (i32, i32) {
    %c0_i32 = arith.constant 0 : i32
    %c0_i32_0 = arith.constant 0 : i32
    %c0_i32_1 = arith.constant 0 : i32
    return %c0_i32, %c0_i32_0 : i32, i32
  }
  func.func @transform_6(%arg0: i32) -> (i32, i32) {
    %c0_i32 = arith.constant 0 : i32
    %c0_i32_0 = arith.constant 0 : i32
    %c0_i32_1 = arith.constant 0 : i32
    return %c0_i32, %c0_i32_0 : i32, i32
  }
  func.func @transform_7(%arg0: i32) -> (i32, i32) {
    %c0_i32 = arith.constant 0 : i32
    %c0_i32_0 = arith.constant 0 : i32
    %c0_i32_1 = arith.constant 0 : i32
    return %c0_i32, %c0_i32_0 : i32, i32
  }
  func.func @transform_8(%arg0: i32) -> (i32, i32) {
    %c0_i32 = arith.constant 0 : i32
    %c0_i32_0 = arith.constant 0 : i32
    %c0_i32_1 = arith.constant 0 : i32
    return %c0_i32, %c0_i32_0 : i32, i32
  }
  func.func @transform_9(%arg0: i32) -> (i32, i32) {
    %c0_i32 = arith.constant 0 : i32
    %c0_i32_0 = arith.constant 0 : i32
    return %c0_i32, %arg0 : i32, i32
  }
}

</mosaic_0001>

<llo_original>
// kernel: _lambda_.1
$region0: #{_lambda_.1}
  #allocation0 [shape = 'u32[]', space=smem, size = 0x4, offset = 0x4, fixed_abs, tag = 'smem constant byte address 0x4 - core index']
  #allocation1 [shape = 'u32[144,128]{1,0:T(1,128)}', space=vmem, size = 0x12000, scoped, tag = 'internal scratch']
  #allocation2 [shape = 'f32[1,1]{1,0:T(1,128)S(1)}', space=vmem, size = 0x200, scoped, tag = 'scoped memory for _lambda_.1']
  %s0 = inlined_call_operand.vmem [shape: f32[12,256], index: 0, kind: input, shape index: {}]
  %s1 = inlined_call_operand.vmem [shape: f32[4,256], index: 1, kind: input, shape index: {}]
  %s2 = inlined_call_operand.hbm [shape: bf16[32,12], index: 2, kind: input, shape index: {}]
  %s3 = inlined_call_operand.hbm [shape: bf16[32,4], index: 3, kind: input, shape index: {}]
  %s4 = inlined_call_operand.vmem [shape: f32[32,1], index: 4, kind: input, shape index: {}]
  %s5 = inlined_call_operand.vmem [shape: bf16[32,32], index: 5, kind: input, shape index: {}]
  %s6 = inlined_call_operand.vmem [shape: f32[32,1], index: 6, kind: input, shape index: {}]
  %s7 = inlined_call_operand.vmem [shape: bf16[1,32], index: 7, kind: input, shape index: {}]
  %s8 = inlined_call_operand.<no memory space> [shape: f32[1,1], index: 8, kind: input, shape index: {}]
  %s9 = inlined_call_operand.vmem [shape: f32[1,256], index: 9, kind: output, shape index: {}]
  %s10 = sld [smem:[#allocation0]]
  $region54: #{_lambda_.1} parent=0
    _
  %s12 = ssub.s32 1, %s10
  %s13 = scalar_select 0, %s12, %s10
  %v14 = vstv %s8
  %15 = vst [vmem:[#allocation2] sm:$0x1] %v14
  $region1: #{_lambda_.1} parent=0
    #allocation3 [shape = 'u8[8192]{0}', space=vmem, size = 0x2000, scoped, tag = 'input window, operand 2, single buffered']
    #allocation4 [shape = 's32[1]{0}', space=sflag, size = 0x4, scoped, tag = 'scoped memory for _lambda_.1']
    #allocation5 [shape = 'u8[8192]{0}', space=vmem, size = 0x2000, scoped, tag = 'input window, operand 3, single buffered']
    #allocation6 [shape = 's32[1]{0}', space=sflag, size = 0x4, scoped, tag = 'scoped memory for _lambda_.1']
    %16 = vsyncpa [#allocation4], 0
    %17 = vsyncpa [#allocation6], 0
    // Predicated region
    $region2: #{_lambda_.1} parent=1 // pred_check
      _
    $region3: #{_lambda_.1} parent=1 // pred_check_branch
      %19 = sbr.rel (0) target = $region5
    $region4: #{_lambda_.1} parent=1 // pred_region
      _
    $region5: #{_lambda_.1} parent=1 // pred_fallthru
      _
    // Predicated region
    $region6: #{_lambda_.1} parent=1 // pred_check
      _
    $region7: #{_lambda_.1} parent=1 // pred_check_branch
      %21 = sbr.rel (0) target = $region9
    $region8: #{_lambda_.1} parent=1 // pred_region
      _
    $region9: #{_lambda_.1} parent=1 // pred_fallthru
      _
    // Predicated region
    $region10: #{_lambda_.1} parent=1 // pred_check
      _
    $region11: #{_lambda_.1} parent=1 // pred_check_branch
      %23 = sbr.rel (0) target = $region13
    $region12: #{_lambda_.1} parent=1 // pred_region
      %s25 = ssub.s32 256, 256
      %26 = vsyncadd [#allocation4], %s25
      %s27 = sshll.u32 [#allocation3], 4
      %s28 = int_to_ptr.vmem [resolvable:$true] %s27
      %33 = dma.hbm_to_vmem [thread:$0]  %s2, 256, %s28, [#allocation4], 64, 64, 4
    $region13: #{_lambda_.1} parent=1 // pred_fallthru
      _
    // Predicated region
    $region14: #{_lambda_.1} parent=1 // pred_check
      _
    $region15: #{_lambda_.1} parent=1 // pred_check_branch
      %35 = sbr.rel (0) target = $region17
    $region16: #{_lambda_.1} parent=1 // pred_region
      %s37 = ssub.s32 256, 256
      %38 = vsyncadd [#allocation6], %s37
      %s39 = sshll.u32 [#allocation5], 4
      %s40 = int_to_ptr.vmem [resolvable:$true] %s39
      %45 = dma.hbm_to_vmem [thread:$0]  %s3, 256, %s40, [#allocation6], 64, 64, 4
    $region17: #{_lambda_.1} parent=1 // pred_fallthru
      _
    // Predicated region
    $region18: #{_lambda_.1} parent=1 // pred_check
      _
    $region19: #{_lambda_.1} parent=1 // pred_check_branch
      %47 = sbr.rel (0) target = $region21
    $region20: #{_lambda_.1} parent=1 // pred_region
      _
    $region21: #{_lambda_.1} parent=1 // pred_fallthru
      _
    // Predicated region
    $region22: #{_lambda_.1} parent=1 // pred_check
      _
    $region23: #{_lambda_.1} parent=1 // pred_check_branch
      %49 = sbr.rel (0) target = $region25
    $region24: #{_lambda_.1} parent=1 // pred_region
      _
    $region25: #{_lambda_.1} parent=1 // pred_fallthru
      _
    // Predicated region
    $region26: #{_lambda_.1} parent=1 // pred_check
      _
    $region27: #{_lambda_.1} parent=1 // pred_check_branch
      %51 = sbr.rel (0) target = $region29
    $region28: #{_lambda_.1} parent=1 // pred_region
      _
    $region29: #{_lambda_.1} parent=1 // pred_fallthru
      _
    // Predicated region
    $region30: #{_lambda_.1} parent=1 // pred_check
      _
    $region31: #{_lambda_.1} parent=1 // pred_check_branch
      %53 = sbr.rel (0) target = $region33
    $region32: #{_lambda_.1} parent=1 // pred_region
      _
    $region33: #{_lambda_.1} parent=1 // pred_fallthru
      _
    // Predicated region
    $region34: #{_lambda_.1} parent=1 // pred_check
      _
    $region35: #{_lambda_.1} parent=1 // pred_check_branch
      %55 = sbr.rel (0) target = $region37
    $region36: #{_lambda_.1} parent=1 // pred_region
      _
    $region37: #{_lambda_.1} parent=1 // pred_fallthru
      _
    // Predicated region
    $region38: #{_lambda_.1} parent=1 // pred_check
      _
    $region39: #{_lambda_.1} parent=1 // pred_check_branch
      %57 = sbr.rel (0) target = $region41
    $region40: #{_lambda_.1} parent=1 // pred_region
      %58 = dma.done [#allocation4], 256
    $region41: #{_lambda_.1} parent=1 // pred_fallthru
      _
    // Predicated region
    $region42: #{_lambda_.1} parent=1 // pred_check
      _
    $region43: #{_lambda_.1} parent=1 // pred_check_branch
      %60 = sbr.rel (0) target = $region45
    $region44: #{_lambda_.1} parent=1 // pred_region
      %61 = dma.done [#allocation6], 256
    $region45: #{_lambda_.1} parent=1 // pred_fallthru
      _
    %v63 = vld [vmem:[%s0] sm:$0xff]
    %v64 = vld [vmem:[%s0 + $0x8] sm:$0xff]
    %v65 = vld [vmem:[%s0 + $0x10] sm:$0xf]
    %v66 = vld [vmem:[%s0 + $0x18] sm:$0xf]
    %v67 = vpack.c.bf16 %v65, %v63
    %v68 = vpack.c.bf16 %v66, %v64
    %v69 = vld [vmem:[%s1] sm:$0xff]
    %v71 = vcombine.high %v69, %v69
    %v73 = vpack.c.bf16 %v69, %v69
    %v74 = vpack.c.bf16 %v71, %v71
    %v75 = vld [vmem:[#allocation3] sm:$0xf]
    %v76 = vld [vmem:[#allocation3 + $0x4] sm:$0xf]
    %v77 = vld [vmem:[#allocation3 + $0x8] sm:$0xf]
    %v78 = vld [vmem:[#allocation3 + $0xc] sm:$0xf]
    %v79 = vld [vmem:[#allocation5] sm:$0xf]
    %v80 = vld [vmem:[#allocation5 + $0x4] sm:$0xf]
    %v81 = vld [vmem:[#allocation5 + $0x8] sm:$0xf]
    %v82 = vld [vmem:[#allocation5 + $0xc] sm:$0xf]
    %v87 = vunpack.c.l.b16 %v79
    %v88 = vunpack.c.l.b16 %v80
    %v89 = vunpack.c.l.b16 %v81
    %v90 = vunpack.c.l.b16 %v82
    %v91 = vpack.c.b16 %v88, %v87
    %v92 = vpack.c.b16 %v90, %v89
    %vm93 = vcmask 31744
    %v95 = vsel %vm93, %v91, 0
    %v98 = vsel %vm93, %v92, 0
    %vm100 = vcmask 1041408
    %v102 = vsel %vm100, %v73, 0
    %v105 = vsel %vm100, %v74, 0
    %107 = vmatprep.subr.bf16.mxu0 0
    %108 = vmatpush1.bf16.msra.mxu0 0
    %109 = vmatprep.subr.bf16.mxu0 0
    %110 = vmatpush1.bf16.msra.mxu0 0
    %111 = vmatprep.subr.bf16.mxu0 0
    %112 = vmatpush1.bf16.msra.mxu0 0
    %113 = vmatprep.subr.bf16.mxu0 0
    %114 = vmatpush1.bf16.msra.mxu0 0
    %115 = vmatprep.subr.bf16.mxu0 0
    %116 = vmatpush1.bf16.msra.mxu0 0
    %117 = vmatprep.subr.bf16.mxu0 0
    %118 = vmatpush1.bf16.msra.mxu0 0
    %119 = vmatprep.subr.bf16.mxu0 0
    %120 = vmatpush1.bf16.msra.mxu0 0
    %121 = vmatprep.subr.bf16.mxu0 %v105
    %122 = vmatpush1.bf16.msra.mxu0 %v102
    %123 = vmatprep.subr.bf16.mxu0 0
    %124 = vmatpush2.bf16.msra.mxu0 0
    %125 = vmatprep.subr.bf16.mxu0 0
    %126 = vmatpush2.bf16.msra.mxu0 0
    %127 = vmatprep.subr.bf16.mxu0 0
    %128 = vmatpush2.bf16.msra.mxu0 0
    %129 = vmatprep.subr.bf16.mxu0 0
    %130 = vmatpush2.bf16.msra.mxu0 0
    %131 = vmatprep.subr.bf16.mxu0 0
    %132 = vmatpush2.bf16.msra.mxu0 0
    %133 = vmatprep.subr.bf16.mxu0 0
    %134 = vmatpush2.bf16.msra.mxu0 0
    %135 = vmatprep.subr.bf16.mxu0 0
    %136 = vmatpush2.bf16.msra.mxu0 0
    %137 = vmatprep.subr.bf16.mxu0 0
    %138 = vmatpush2.bf16.msra.mxu0 0
    %139 = vmatprep.mubr.bf16.mxu0 0
    %140 = vmatmul.mubr.bf16.gmra.mxu0 %v95
    %v141 = vpop.f32.mrf.mxu0
    %v142 = vadd.f32 0.0, %v141
    %v143 = vpop.f32.mrf.mxu0
    %v144 = vadd.f32 0.0, %v143
    %v145 = vpop.f32.mrf.mxu0
    %v146 = vadd.f32 0.0, %v145
    %v147 = vpop.f32.mrf.mxu0
    %v148 = vadd.f32 0.0, %v147
    %149 = vmatprep.mubr.bf16.mxu0 0
    %150 = vmatmul.mubr.bf16.gmra.mxu0 %v98
    %v151 = vpop.f32.mrf.mxu0
    %v152 = vadd.f32 0.0, %v151
    %v153 = vpop.f32.mrf.mxu0
    %v154 = vadd.f32 0.0, %v153
    %v155 = vpop.f32.mrf.mxu0
    %v156 = vadd.f32 0.0, %v155
    %v157 = vpop.f32.mrf.mxu0
    %v158 = vadd.f32 0.0, %v157
    %159 = vdwg.mxu0
    %v164 = vunpack.c.l.b16 %v75
    %v165 = vunpack.c.l.b16 %v76
    %v166 = vunpack.c.l.b16 %v77
    %v167 = vunpack.c.l.b16 %v78
    %v168 = vpack.c.b16 %v165, %v164
    %v169 = vpack.c.b16 %v167, %v166
    %vm170 = vcmask 97280
    %v172 = vsel %vm170, %v168, 0
    %v175 = vsel %vm170, %v169, 0
    %vm177 = vcmask 1045504
    %v179 = vsel %vm177, %v67, 0
    %v182 = vsel %vm177, %v68, 0
    %184 = vmatprep.subr.bf16.mxu0 0
    %185 = vmatpush1.bf16.msra.mxu0 0
    %186 = vmatprep.subr.bf16.mxu0 0
    %187 = vmatpush1.bf16.msra.mxu0 0
    %188 = vmatprep.subr.bf16.mxu0 0
    %189 = vmatpush1.bf16.msra.mxu0 0
    %190 = vmatprep.subr.bf16.mxu0 0
    %191 = vmatpush1.bf16.msra.mxu0 0
    %192 = vmatprep.subr.bf16.mxu0 0
    %193 = vmatpush1.bf16.msra.mxu0 0
    %194 = vmatprep.subr.bf16.mxu0 0
    %195 = vmatpush1.bf16.msra.mxu0 0
    %196 = vmatprep.subr.bf16.mxu0 0
    %197 = vmatpush1.bf16.msra.mxu0 0
    %198 = vmatprep.subr.bf16.mxu0 %v182
    %199 = vmatpush1.bf16.msra.mxu0 %v179
    %200 = vmatprep.subr.bf16.mxu0 0
    %201 = vmatpush2.bf16.msra.mxu0 0
    %202 = vmatprep.subr.bf16.mxu0 0
    %203 = vmatpush2.bf16.msra.mxu0 0
    %204 = vmatprep.subr.bf16.mxu0 0
    %205 = vmatpush2.bf16.msra.mxu0 0
    %206 = vmatprep.subr.bf16.mxu0 0
    %207 = vmatpush2.bf16.msra.mxu0 0
    %208 = vmatprep.subr.bf16.mxu0 0
    %209 = vmatpush2.bf16.msra.mxu0 0
    %210 = vmatprep.subr.bf16.mxu0 0
    %211 = vmatpush2.bf16.msra.mxu0 0
    %212 = vmatprep.subr.bf16.mxu0 0
    %213 = vmatpush2.bf16.msra.mxu0 0
    %214 = vmatprep.subr.bf16.mxu0 0
    %215 = vmatpush2.bf16.msra.mxu0 0
    %216 = vmatprep.mubr.bf16.mxu0 0
    %217 = vmatmul.mubr.bf16.gmra.mxu0 %v172
    %v218 = vpop.f32.mrf.mxu0
    %v219 = vadd.f32 %v142, %v218
    %v220 = vpop.f32.mrf.mxu0
    %v221 = vadd.f32 %v144, %v220
    %v222 = vpop.f32.mrf.mxu0
    %v223 = vadd.f32 %v146, %v222
    %v224 = vpop.f32.mrf.mxu0
    %v225 = vadd.f32 %v148, %v224
    %226 = vmatprep.mubr.bf16.mxu0 0
    %227 = vmatmul.mubr.bf16.gmra.mxu0 %v175
    %v228 = vpop.f32.mrf.mxu0
    %v229 = vadd.f32 %v152, %v228
    %v230 = vpop.f32.mrf.mxu0
    %v231 = vadd.f32 %v154, %v230
    %v232 = vpop.f32.mrf.mxu0
    %v233 = vadd.f32 %v156, %v232
    %v234 = vpop.f32.mrf.mxu0
    %v235 = vadd.f32 %v158, %v234
    %236 = vdwg.mxu0
    %v237 = vld [vmem:[%s4] sm:$0xff]
    %v238 = vld [vmem:[%s4 + $0x8] sm:$0xff]
    %v239 = vld [vmem:[%s4 + $0x10] sm:$0xff]
    %v240 = vld [vmem:[%s4 + $0x18] sm:$0xff]
    %242 = vset.pattern.permute.xlu0 0
    %243 = vperm.xlu0 %242, %v237
    %v244 = vpop.permute.xlu0 %243
    %247 = vset.pattern.permute.xlu0 0
    %248 = vperm.xlu0 %247, %v238
    %v249 = vpop.permute.xlu0 %248
    %252 = vset.pattern.permute.xlu0 0
    %253 = vperm.xlu0 %252, %v239
    %v254 = vpop.permute.xlu0 %253
    %257 = vset.pattern.permute.xlu0 0
    %258 = vperm.xlu0 %257, %v240
    %v259 = vpop.permute.xlu0 %258
    %v261 = vadd.f32 %v219, %v244
    %v262 = vadd.f32 %v221, %v244
    %v263 = vadd.f32 %v223, %v249
    %v264 = vadd.f32 %v225, %v249
    %v265 = vadd.f32 %v229, %v254
    %v266 = vadd.f32 %v231, %v254
    %v267 = vadd.f32 %v233, %v259
    %v268 = vadd.f32 %v235, %v259
    %v269 = vmax.f32 %v261, 0.0
    %v270 = vmax.f32 %v262, 0.0
    %v271 = vmax.f32 %v263, 0.0
    %v272 = vmax.f32 %v264, 0.0
    %v273 = vmax.f32 %v265, 0.0
    %v274 = vmax.f32 %v266, 0.0
    %v275 = vmax.f32 %v267, 0.0
    %v276 = vmax.f32 %v268, 0.0
    %v277 = vld [vmem:[%s5] sm:$0xf]
    %v278 = vld [vmem:[%s5 + $0x4] sm:$0xf]
    %v279 = vld [vmem:[%s5 + $0x8] sm:$0xf]
    %v280 = vld [vmem:[%s5 + $0xc] sm:$0xf]
    %v281 = vpack.c.bf16 %v271, %v269
    %v282 = vpack.c.bf16 %v272, %v270
    %v283 = vpack.c.bf16 %v275, %v273
    %v284 = vpack.c.bf16 %v276, %v274
    %v285 = vld [vmem:[%s6] sm:$0xff]
    %v286 = vld [vmem:[%s6 + $0x8] sm:$0xff]
    %v287 = vld [vmem:[%s6 + $0x10] sm:$0xff]
    %v288 = vld [vmem:[%s6 + $0x18] sm:$0xff]
    %290 = vset.pattern.permute.xlu0 0
    %291 = vperm.xlu0 %290, %v285
    %v292 = vpop.permute.xlu0 %291
    %295 = vset.pattern.permute.xlu0 0
    %296 = vperm.xlu0 %295, %v286
    %v297 = vpop.permute.xlu0 %296
    %300 = vset.pattern.permute.xlu0 0
    %301 = vperm.xlu0 %300, %v287
    %v302 = vpop.permute.xlu0 %301
    %305 = vset.pattern.permute.xlu0 0
    %306 = vperm.xlu0 %305, %v288
    %v307 = vpop.permute.xlu0 %306
    %v313 = vunpack.c.l.b16 %v277
    %v314 = vunpack.c.l.b16 %v278
    %v315 = vunpack.c.l.b16 %v279
    %v316 = vunpack.c.l.b16 %v280
    %v317 = vpack.c.b16 %v314, %v313
    %v318 = vpack.c.b16 %v316, %v315
    %vm319 = vcmask 261120
    %v321 = vsel %vm319, %v317, 0
    %v324 = vsel %vm319, %v318, 0
    %326 = vmatprep.subr.bf16.mxu0 0
    %327 = vmatpush1.bf16.msra.mxu0 0
    %328 = vmatprep.subr.bf16.mxu0 0
    %329 = vmatpush1.bf16.msra.mxu0 0
    %330 = vmatprep.subr.bf16.mxu0 0
    %331 = vmatpush1.bf16.msra.mxu0 0
    %332 = vmatprep.subr.bf16.mxu0 0
    %333 = vmatpush1.bf16.msra.mxu0 0
    %334 = vmatprep.subr.bf16.mxu0 0
    %335 = vmatpush1.bf16.msra.mxu0 0
    %336 = vmatprep.subr.bf16.mxu0 0
    %337 = vmatpush1.bf16.msra.mxu0 0
    %338 = vmatprep.subr.bf16.mxu0 %v284
    %339 = vmatpush1.bf16.msra.mxu0 %v283
    %340 = vmatprep.subr.bf16.mxu0 %v282
    %341 = vmatpush1.bf16.msra.mxu0 %v281
    %342 = vmatprep.subr.bf16.mxu0 0
    %343 = vmatpush2.bf16.msra.mxu0 0
    %344 = vmatprep.subr.bf16.mxu0 0
    %345 = vmatpush2.bf16.msra.mxu0 0
    %346 = vmatprep.subr.bf16.mxu0 0
    %347 = vmatpush2.bf16.msra.mxu0 0
    %348 = vmatprep.subr.bf16.mxu0 0
    %349 = vmatpush2.bf16.msra.mxu0 0
    %350 = vmatprep.subr.bf16.mxu0 0
    %351 = vmatpush2.bf16.msra.mxu0 0
    %352 = vmatprep.subr.bf16.mxu0 0
    %353 = vmatpush2.bf16.msra.mxu0 0
    %354 = vmatprep.subr.bf16.mxu0 0
    %355 = vmatpush2.bf16.msra.mxu0 0
    %356 = vmatprep.subr.bf16.mxu0 0
    %357 = vmatpush2.bf16.msra.mxu0 0
    %358 = vmatprep.mubr.bf16.mxu0 0
    %359 = vmatmul.mubr.bf16.gmra.mxu0 %v321
    %v360 = vpop.f32.mrf.mxu0
    %v361 = vadd.f32 %v292, %v360
    %v362 = vpop.f32.mrf.mxu0
    %v363 = vadd.f32 %v292, %v362
    %v364 = vpop.f32.mrf.mxu0
    %v365 = vadd.f32 %v297, %v364
    %v366 = vpop.f32.mrf.mxu0
    %v367 = vadd.f32 %v297, %v366
    %368 = vmatprep.mubr.bf16.mxu0 0
    %369 = vmatmul.mubr.bf16.gmra.mxu0 %v324
    %v370 = vpop.f32.mrf.mxu0
    %v371 = vadd.f32 %v302, %v370
    %v372 = vpop.f32.mrf.mxu0
    %v373 = vadd.f32 %v302, %v372
    %v374 = vpop.f32.mrf.mxu0
    %v375 = vadd.f32 %v307, %v374
    %v376 = vpop.f32.mrf.mxu0
    %v377 = vadd.f32 %v307, %v376
    %378 = vdwg.mxu0
    %v379 = vmax.f32 %v361, 0.0
    %v380 = vmax.f32 %v363, 0.0
    %v381 = vmax.f32 %v365, 0.0
    %v382 = vmax.f32 %v367, 0.0
    %v383 = vmax.f32 %v371, 0.0
    %v384 = vmax.f32 %v373, 0.0
    %v385 = vmax.f32 %v375, 0.0
    %v386 = vmax.f32 %v377, 0.0
    %v387 = vld [vmem:[%s7] sm:$0x1]
    %v388 = vpack.c.bf16 %v381, %v379
    %v389 = vpack.c.bf16 %v382, %v380
    %v390 = vpack.c.bf16 %v385, %v383
    %v391 = vpack.c.bf16 %v386, %v384
    %v392 = vld [vmem:[#allocation2] sm:$0x1]
    %394 = vset.pattern.permute.xlu0 0
    %395 = vperm.xlu0 %394, %v392
    %v396 = vpop.permute.xlu0 %395
    %v398 = vlaneseq
    %v399 = vshrl.u32 %v398, 7
    %v400 = vsub.s32 0, %v399
    %v401 = vrot.slane %v396, %v400
    %v403 = vsel %vm319, %v387, 0
    %405 = vmatprep.subr.bf16.mxu0 0
    %406 = vmatpush1.bf16.msra.mxu0 0
    %407 = vmatprep.subr.bf16.mxu0 0
    %408 = vmatpush1.bf16.msra.mxu0 0
    %409 = vmatprep.subr.bf16.mxu0 0
    %410 = vmatpush1.bf16.msra.mxu0 0
    %411 = vmatprep.subr.bf16.mxu0 0
    %412 = vmatpush1.bf16.msra.mxu0 0
    %413 = vmatprep.subr.bf16.mxu0 0
    %414 = vmatpush1.bf16.msra.mxu0 0
    %415 = vmatprep.subr.bf16.mxu0 0
    %416 = vmatpush1.bf16.msra.mxu0 0
    %417 = vmatprep.subr.bf16.mxu0 %v391
    %418 = vmatpush1.bf16.msra.mxu0 %v390
    %419 = vmatprep.subr.bf16.mxu0 %v389
    %420 = vmatpush1.bf16.msra.mxu0 %v388
    %421 = vmatprep.subr.bf16.mxu0 0
    %422 = vmatpush2.bf16.msra.mxu0 0
    %423 = vmatprep.subr.bf16.mxu0 0
    %424 = vmatpush2.bf16.msra.mxu0 0
    %425 = vmatprep.subr.bf16.mxu0 0
    %426 = vmatpush2.bf16.msra.mxu0 0
    %427 = vmatprep.subr.bf16.mxu0 0
    %428 = vmatpush2.bf16.msra.mxu0 0
    %429 = vmatprep.subr.bf16.mxu0 0
    %430 = vmatpush2.bf16.msra.mxu0 0
    %431 = vmatprep.subr.bf16.mxu0 0
    %432 = vmatpush2.bf16.msra.mxu0 0
    %433 = vmatprep.subr.bf16.mxu0 0
    %434 = vmatpush2.bf16.msra.mxu0 0
    %435 = vmatprep.subr.bf16.mxu0 0
    %436 = vmatpush2.bf16.msra.mxu0 0
    %437 = vmatprep.mubr.bf16.mxu0 0
    %438 = vmatmul.mubr.bf16.gmra.mxu0 %v403
    %v439 = vpop.f32.mrf.mxu0
    %v440 = vadd.f32 %v401, %v439
    %v441 = vpop.f32.mrf.mxu0
    %v442 = vadd.f32 %v401, %v441
    %v443 = vpop.f32.mrf.mxu0
    %v444 = vpop.f32.mrf.mxu0
    %445 = vdwg.mxu0
    %v448 = vcombine.low %v440, %v442
    %v450 = vunpack.c.l.s4 1966171168
    %v451 = vunpack.c.0.s8 %v450
    %v452 = vlaneseq
    %v453 = vshrl.u32 %v452, 7
    %v454 = vsub.s32 %v451, %v453
    %v455 = vrot.slane %v448, %v454
    %v457 = vunpack.c.l.s4 1966171168
    %v458 = vunpack.c.0.s8 %v457
    %v459 = vlaneseq
    %v460 = vshrl.u32 %v459, 7
    %v461 = vsub.s32 %v458, %v460
    %v462 = vrot.slane %v455, %v461
    %v464 = vlaneseq
    %vm465 = vcmp.ge.s32.totalorder %v464, 0
    %vm466 = vcmp.lt.s32.totalorder %v464, 256
    %vm467 = vmand %vm465, %vm466
    %468 = vst.msk [vmem:[%s9] sm:$0x3] %vm467, %v462
    // Predicated region
    $region46: #{_lambda_.1} parent=1 // pred_check
      _
    $region47: #{_lambda_.1} parent=1 // pred_check_branch
      %470 = sbr.rel (0) target = $region49
    $region48: #{_lambda_.1} parent=1 // pred_region
      _
    $region49: #{_lambda_.1} parent=1 // pred_fallthru
      _
    // Predicated region
    $region50: #{_lambda_.1} parent=1 // pred_check
      _
    $region51: #{_lambda_.1} parent=1 // pred_check_branch
      %472 = sbr.rel (0) target = $region53
    $region52: #{_lambda_.1} parent=1 // pred_region
      _
    $region53: #{_lambda_.1} parent=1 // pred_fallthru
      _
    %473 = vsyncpa [#allocation4], 1
    %474 = vsyncpa [#allocation6], 1

</llo_original>
